<compile_context>
chip_gen: v7x
topology: tpu7x:2x2x1
jax: 0.10.0
libtpu: 0.0.40
codegen_flags: <defaults>
</compile_context>

<pallas_src>
import functools

import jax
import jax.numpy as jnp
from jax.experimental import pallas as pl
from jax.experimental.pallas import tpu as pltpu


def _round_up(x: int, m: int) -> int:
    return ((x + m - 1) // m) * m


def _choose_tm(M: int, cap: int):
    """Largest tile <= cap that is a multiple of 8 and (preferably) divides M."""
    cap = max(8, min(cap, _round_up(M, 8)))
    start = cap - (cap % 8)
    for tm in range(start, 7, -8):
        if M % tm == 0:
            return tm, M            # exact divisor -> no M padding
    tm = max(8, start)
    return tm, _round_up(M, tm)     # fallback: pad M up to a tile multiple


def _vmem_bytes(tm: int, tn: int, K: int, out_itemsize: int) -> int:
    """Conservative double-buffered VMEM footprint of one grid step."""
    x_b = tm * K * 2            # bf16 activations
    w_b = K * tn * 2            # bf16 weight
    b_b = tn * 4                # f32 bias
    o_b = tm * tn * out_itemsize
    return 2 * (x_b + w_b + b_b + o_b)


def _linear_kernel(x_ref, w_ref, b_ref, o_ref):
    # x_ref: (tm, K) bf16, w_ref: (K, tn) bf16, b_ref: (1, tn) f32,
    # o_ref: (tm, tn).  Single MXU matmul over full K; bias fused in epilogue.
    acc = jnp.dot(x_ref[...], w_ref[...], preferred_element_type=jnp.float32)
    o_ref[...] = (acc + b_ref[...]).astype(o_ref.dtype)


@functools.partial(jax.jit, static_argnames=("tm_cap", "tn_cap"))
def image_channel_forward(features, weight, bias, *, tm_cap=512, tn_cap=1024):
    """
    features: [B, S, in_features]            (f32; cast to bf16 for the MXU)
    weight:   [embed_size, in_features]      (PyTorch nn.Linear layout)
    bias:     [embed_size]
    returns:  [B, S, embed_size] in features.dtype
    """
    B, S, K = features.shape
    N, K_w = weight.shape
    assert K_w == K, (weight.shape, K)
    assert bias.shape == (N,), bias.shape

    M = B * S
    out_dtype = features.dtype
    out_itemsize = jnp.dtype(out_dtype).itemsize
    compute_dtype = jnp.bfloat16  # MXU-native inputs, f32 accumulation

    # ---- tile selection -------------------------------------------------
    # Full-K blocks (no K grid axis); full-N when it fits (weight streamed once).
    tn = _round_up(min(tn_cap, _round_up(N, 128)), 128)
    Np = _round_up(N, tn)
    tm, Mp = _choose_tm(M, tm_cap)

    # Keep the double-buffered working set under the scoped-VMEM limit on every
    # generation (v7x: 32 MiB scoped / 64 MiB physical).
    VMEM_BUDGET = 28 * 1024 * 1024
    while _vmem_bytes(tm, tn, K, out_itemsize) > VMEM_BUDGET and tm > 8:
        tm, Mp = _choose_tm(M, tm // 2)
    while _vmem_bytes(tm, tn, K, out_itemsize) > VMEM_BUDGET and tn > 128:
        tn = max(128, ((tn // 2) // 128) * 128)
        Np = _round_up(N, tn)
    # TODO(synk): if in_features were ever so large that even (8, K) x (K, 128)
    # blocks exceed VMEM, a K-reduction grid axis would need to be reintroduced.

    grid_m = Mp // tm
    grid_n = Np // tn

    # ---- operand preparation --------------------------------------------
    x2d = features.reshape(M, K).astype(compute_dtype)
    if Mp != M:  # never taken when tm divides M (e.g. M = 36*B)
        x2d = jnp.pad(x2d, ((0, Mp - M), (0, 0)))

    # One-time layout fix: [N, K] -> [K, N], fused with the bf16 cast, so the
    # kernel does a plain (tm,K)@(K,tn) matmul with no per-tile transpose.
    wT = weight.T.astype(compute_dtype)
    b2d = bias.astype(jnp.float32).reshape(1, N)
    if Np != N:
        wT = jnp.pad(wT, ((0, 0), (0, Np - N)))
        b2d = jnp.pad(b2d, ((0, 0), (0, Np - N)))

    # ---- grid: N outer, M inner -> weight block constant over the M loop ----
    grid = (grid_n, grid_m)

    cost = pl.CostEstimate(
        flops=2 * Mp * Np * K,
        bytes_accessed=(
            grid_n * Mp * K * 2        # activations, once per N tile
            + K * Np * 2               # weight, streamed once
            + Np * 4                   # bias
            + Mp * Np * out_itemsize   # output
        ),
        transcendentals=0,
    )

    out = pl.pallas_call(
        _linear_kernel,
        out_shape=jax.ShapeDtypeStruct((Mp, Np), out_dtype),
        grid_spec=pltpu.PrefetchScalarGridSpec(
            num_scalar_prefetch=0,
            grid=grid,
            in_specs=[
                pl.BlockSpec((tm, K), lambda j, i: (i, 0)),   # x   (full K)
                pl.BlockSpec((K, tn), lambda j, i: (0, j)),   # W^T (full K)
                pl.BlockSpec((1, tn), lambda j, i: (0, j)),   # bias
            ],
            out_specs=pl.BlockSpec((tm, tn), lambda j, i: (i, j)),
        ),
        compiler_params=pltpu.CompilerParams(
            dimension_semantics=("parallel", "parallel"),
            vmem_limit_bytes=32 * 1024 * 1024,
        ),
        cost_estimate=cost,
    )(x2d, wT, b2d)

    return out[:M, :N].reshape(B, S, N)


def _reference(features, weight, bias):
    return (
        jnp.einsum("bsk,nk->bsn", features, weight,
                   preferred_element_type=jnp.float32)
        + bias
    )


if __name__ == "__main__":
    # Small shapes consistent with the module: [B, S, in_features] -> [B, S, embed_size]
    B, S = 2, 8
    in_features = 64
    embed_size = 32

    key = jax.random.PRNGKey(0)
    k_feat, k_w, k_b = jax.random.split(key, 3)

    features = jax.random.normal(k_feat, (B, S, in_features), dtype=jnp.float32)

    # PyTorch nn.Linear-like uniform init bound (synthetic but deterministic).
    bound = 1.0 / (in_features ** 0.5)
    weight = jax.random.uniform(
        k_w, (embed_size, in_features), dtype=jnp.float32, minval=-bound, maxval=bound
    )
    bias = jax.random.uniform(
        k_b, (embed_size,), dtype=jnp.float32, minval=-bound, maxval=bound
    )

    out = image_channel_forward(features, weight, bias)
    out = jax.block_until_ready(out)

    ref = _reference(features, weight, bias)
    assert out.shape == (B, S, embed_size), out.shape
    # bf16 MXU inputs with f32 accumulation -> relaxed tolerance vs f32 reference.
    assert jnp.allclose(out.astype(jnp.float32), ref, atol=2e-2, rtol=2e-2), (
        float(jnp.max(jnp.abs(out.astype(jnp.float32) - ref)))
    )

    print("KERNEL_OK")
</pallas_src>

<mosaic_0001>
module attributes {stable_mosaic.version = 11 : i64} {
  func.func @_linear_kernel(%arg0: i32, %arg1: i32, %arg2: memref<16x64xbf16, #tpu.memory_space<vmem>>, %arg3: memref<64x128xbf16, #tpu.memory_space<vmem>>, %arg4: memref<1x128xf32, #tpu.memory_space<vmem>>, %arg5: memref<16x128xf32, #tpu.memory_space<vmem>>) attributes {dimension_semantics = [#tpu.dimension_semantics<parallel>, #tpu.dimension_semantics<parallel>], iteration_bounds = array<i64: 1, 1>, scalar_prefetch = 0 : i64, scratch_operands = 0 : i64, tpu.core_type = #tpu.core_type<tc>, window_params = [{transform_indices = @transform_0, window_bounds = array<i64: 16, 64>}, {transform_indices = @transform_1, window_bounds = array<i64: 64, 128>}, {transform_indices = @transform_2, window_bounds = array<i64: 1, 128>}, {transform_indices = @transform_3, window_bounds = array<i64: 16, 128>}]} {
    %c0 = arith.constant 0 : index
    %c0_0 = arith.constant 0 : index
    %0 = vector.load %arg2[%c0, %c0_0] : memref<16x64xbf16, #tpu.memory_space<vmem>>, vector<16x64xbf16>
    %c0_1 = arith.constant 0 : index
    %c0_2 = arith.constant 0 : index
    %1 = vector.load %arg3[%c0_1, %c0_2] : memref<64x128xbf16, #tpu.memory_space<vmem>>, vector<64x128xbf16>
    %cst = arith.constant dense<0.000000e+00> : vector<16x128xf32>
    %2 = tpu.matmul %0, %1, %cst {dimension_numbers = #tpu.dot_dimension_numbers<[1], [0], [0], [1], [0, 0, 1, 1], [], []>} : vector<16x64xbf16>, vector<64x128xbf16>, vector<16x128xf32> -> vector<16x128xf32>
    %c0_3 = arith.constant 0 : index
    %c0_4 = arith.constant 0 : index
    %3 = vector.load %arg4[%c0_3, %c0_4] : memref<1x128xf32, #tpu.memory_space<vmem>>, vector<1x128xf32>
    %4 = vector.broadcast %3 : vector<1x128xf32> to vector<16x128xf32>
    %5 = arith.addf %2, %4 : vector<16x128xf32>
    %c0_5 = arith.constant 0 : index
    %c0_6 = arith.constant 0 : index
    %6 = vector.load %arg5[%c0_5, %c0_6] : memref<16x128xf32, #tpu.memory_space<vmem>>, vector<16x128xf32>
    tpu.vector_store %arg5[%c0_5, %c0_6], %5 {strides = array<i32>} : memref<16x128xf32, #tpu.memory_space<vmem>>, vector<16x128xf32>,
    return
  }
  func.func @transform_0(%arg0: i32, %arg1: i32) -> (i32, i32) {
    %c0_i32 = arith.constant 0 : i32
    %c0_i32_0 = arith.constant 0 : i32
    return %arg1, %c0_i32 : i32, i32
  }
  func.func @transform_1(%arg0: i32, %arg1: i32) -> (i32, i32) {
    %c0_i32 = arith.constant 0 : i32
    %c0_i32_0 = arith.constant 0 : i32
    return %c0_i32, %arg0 : i32, i32
  }
  func.func @transform_2(%arg0: i32, %arg1: i32) -> (i32, i32) {
    %c0_i32 = arith.constant 0 : i32
    %c0_i32_0 = arith.constant 0 : i32
    return %c0_i32, %arg0 : i32, i32
  }
  func.func @transform_3(%arg0: i32, %arg1: i32) -> (i32, i32) {
    %c0_i32 = arith.constant 0 : i32
    return %arg1, %arg0 : i32, i32
  }
}

</mosaic_0001>

<llo_original>
// kernel: image_channel_forward.1
$region0: #{image_channel_forward.1}
  #allocation0 [shape = 'u32[]', space=smem, size = 0x4, offset = 0x4, fixed_abs, tag = 'smem constant byte address 0x4 - core index']
  #allocation1 [shape = 'u32[144,128]{1,0:T(1,128)}', space=vmem, size = 0x12000, scoped, tag = 'internal scratch']
  %s0 = inlined_call_operand.vmem [shape: bf16[16,64], index: 0, kind: input, shape index: {}]
  %s1 = inlined_call_operand.vmem [shape: bf16[64,128], index: 1, kind: input, shape index: {}]
  %s2 = inlined_call_operand.vmem [shape: f32[1,128], index: 2, kind: input, shape index: {}]
  %s3 = inlined_call_operand.vmem [shape: f32[16,128], index: 3, kind: output, shape index: {}]
  %s4 = sld [smem:[#allocation0]]
  $region22: #{image_channel_forward.1} parent=0
    _
  %s6 = ssub.s32 1, %s4
  %s7 = scalar_select 0, %s6, %s4
  // Predicated region
  $region2: #{image_channel_forward.1} parent=0 // pred_check
    _
  $region3: #{image_channel_forward.1} parent=0 // pred_check_branch
    %9 = sbr.rel (0) target = $region5
  $region4: #{image_channel_forward.1} parent=0 // pred_region
    _
  $region5: #{image_channel_forward.1} parent=0 // pred_fallthru
    _
  // Predicated region
  $region6: #{image_channel_forward.1} parent=0 // pred_check
    _
  $region7: #{image_channel_forward.1} parent=0 // pred_check_branch
    %11 = sbr.rel (0) target = $region9
  $region8: #{image_channel_forward.1} parent=0 // pred_region
    _
  $region9: #{image_channel_forward.1} parent=0 // pred_fallthru
    _
  // Predicated region
  $region10: #{image_channel_forward.1} parent=0 // pred_check
    _
  $region11: #{image_channel_forward.1} parent=0 // pred_check_branch
    %13 = sbr.rel (0) target = $region13
  $region12: #{image_channel_forward.1} parent=0 // pred_region
    _
  $region13: #{image_channel_forward.1} parent=0 // pred_fallthru
    _
  %v15 = vld [vmem:[%s0] sm:$0xf]
  %v16 = vld [vmem:[%s0 + $0x4] sm:$0xf]
  %v17 = vld [vmem:[%s1] sm:$0xf]
  %v18 = vld [vmem:[%s1 + $0x4] sm:$0xf]
  %v19 = vld [vmem:[%s1 + $0x8] sm:$0xf]
  %v20 = vld [vmem:[%s1 + $0xc] sm:$0xf]
  %v21 = vld [vmem:[%s1 + $0x10] sm:$0xf]
  %v22 = vld [vmem:[%s1 + $0x14] sm:$0xf]
  %v23 = vld [vmem:[%s1 + $0x18] sm:$0xf]
  %v24 = vld [vmem:[%s1 + $0x1c] sm:$0xf]
  %v25 = vld [vmem:[%s2] sm:$0x1]
  %v27 = vlaneseq
  %v28 = vshrl.u32 %v27, 7
  %v29 = vsub.s32 0, %v28
  %v30 = vrot.slane %v25, %v29
  %v34 = vunpack.c.l.b16 %v15
  %v35 = vunpack.c.l.b16 %v16
  %v36 = vpack.c.b16 %v35, %v34
  %v45 = vunpack.c.l.b16 %v17
  %v46 = vunpack.c.l.b16 %v18
  %v47 = vunpack.c.l.b16 %v19
  %v48 = vunpack.c.l.b16 %v20
  %v49 = vunpack.c.l.b16 %v21
  %v50 = vunpack.c.l.b16 %v22
  %v51 = vunpack.c.l.b16 %v23
  %v52 = vunpack.c.l.b16 %v24
  %v53 = vpack.c.b16 %v46, %v45
  %v54 = vpack.c.b16 %v48, %v47
  %v55 = vpack.c.b16 %v50, %v49
  %v56 = vpack.c.b16 %v52, %v51
  %vm61 = vcmask 523264
  %v63 = vsel %vm61, %v36, 0
  %65 = vmatprep.subr.bf16.mxu0 0
  %66 = vmatpush1.bf16.msra.mxu0 %v53
  %67 = vmatprep.subr.bf16.mxu0 0
  %68 = vmatpush1.bf16.msra.mxu0 %v54
  %69 = vmatprep.subr.bf16.mxu0 0
  %70 = vmatpush1.bf16.msra.mxu0 %v55
  %71 = vmatprep.subr.bf16.mxu0 0
  %72 = vmatpush1.bf16.msra.mxu0 %v56
  %73 = vmatprep.subr.bf16.mxu0 0
  %74 = vmatpush1.bf16.msra.mxu0 0
  %75 = vmatprep.subr.bf16.mxu0 0
  %76 = vmatpush1.bf16.msra.mxu0 0
  %77 = vmatprep.subr.bf16.mxu0 0
  %78 = vmatpush1.bf16.msra.mxu0 0
  %79 = vmatprep.subr.bf16.mxu0 0
  %80 = vmatpush1.bf16.msra.mxu0 0
  %81 = vmatprep.subr.bf16.mxu0 0
  %82 = vmatpush1.bf16.msra.mxu0 0
  %83 = vmatprep.subr.bf16.mxu0 0
  %84 = vmatpush1.bf16.msra.mxu0 0
  %85 = vmatprep.subr.bf16.mxu0 0
  %86 = vmatpush1.bf16.msra.mxu0 0
  %87 = vmatprep.subr.bf16.mxu0 0
  %88 = vmatpush1.bf16.msra.mxu0 0
  %89 = vmatprep.subr.bf16.mxu0 0
  %90 = vmatpush1.bf16.msra.mxu0 0
  %91 = vmatprep.subr.bf16.mxu0 0
  %92 = vmatpush1.bf16.msra.mxu0 0
  %93 = vmatprep.subr.bf16.mxu0 0
  %94 = vmatpush1.bf16.msra.mxu0 0
  %95 = vmatprep.subr.bf16.mxu0 0
  %96 = vmatpush1.bf16.msra.mxu0 0
  %97 = vmatprep.mubr.bf16.mxu0 0
  %98 = vmatmul.mubr.bf16.gmra.mrb[0].mxu0 %v63
  %v99 = vpop.f32.mrb[0].mxu0
  %v100 = vadd.f32 %v30, %v99
  %v101 = vpop.f32.mrb[0].mxu0
  %v102 = vpop.f32.mrb[0].mxu0
  %v103 = vadd.f32 %v30, %v102
  %v104 = vpop.f32.mrb[0].mxu0
  %105 = vdwg.mxu0
  %106 = vst [vmem:[%s3] sm:$0xff] %v100
  %107 = vst [vmem:[%s3 + $0x8] sm:$0xff] %v103
  // Predicated region
  $region14: #{image_channel_forward.1} parent=0 // pred_check
    _
  $region15: #{image_channel_forward.1} parent=0 // pred_check_branch
    %109 = sbr.rel (0) target = $region17
  $region16: #{image_channel_forward.1} parent=0 // pred_region
    _
  $region17: #{image_channel_forward.1} parent=0 // pred_fallthru
    _
  // Predicated region
  $region18: #{image_channel_forward.1} parent=0 // pred_check
    _
  $region19: #{image_channel_forward.1} parent=0 // pred_check_branch
    %111 = sbr.rel (0) target = $region21
  $region20: #{image_channel_forward.1} parent=0 // pred_region
    _
  $region21: #{image_channel_forward.1} parent=0 // pred_fallthru
    _

</llo_original>
